<compile_context>
chip_gen: v7x
topology: tpu7x:2x2x1
jax: 0.10.0
libtpu: 0.0.40
codegen_flags: <defaults>
</compile_context>

<pallas_src>
import functools

import jax
import jax.numpy as jnp
from jax.experimental import pallas as pl
from jax.experimental.pallas import tpu as pltpu


def _round_up(x, m):
    return (x + m - 1) // m * m


def _sublane_packing(dtype):
    """Rows per packed 32-bit sublane group: 8 for f32, 16 for bf16, 32 for i8."""
    bits = jnp.dtype(dtype).itemsize * 8
    return max(8, 256 // bits)


def _lsce_kernel(x_ref, t_ref, loss_ref, *, num_classes, confidence, smoothing):
    """Label-smoothing CE for one (tn, C) logits tile.

    loss_row = logsumexp(x) - sum(w * x),
      w = confidence + smoothing/C at the target class, smoothing/C elsewhere.
    """
    x = x_ref[...]                                   # (tn, C), input dtype
    tgt = t_ref[...]                                 # (tn, 1) int32
    _, c = x.shape

    # (1, C) class-index row broadcast against (tn, 1) targets -> one-hot mask.
    cls = jax.lax.broadcasted_iota(jnp.int32, (1, c), 1)
    onehot = cls == tgt                              # (tn, C) bool (broadcast)

    # Row max in the input dtype (packed bf16 compares on v6e/v7x), then a
    # single f32 cast of the tile, shared by the exp and the weighted sum.
    m = jnp.max(x, axis=-1, keepdims=True).astype(jnp.float32)   # (tn, 1)
    xf = x.astype(jnp.float32)                                   # (tn, C)

    sumexp = jnp.sum(jnp.exp(xf - m), axis=-1, keepdims=True)    # (tn, 1)
    lse = m + jnp.log(sumexp)                                    # logsumexp(x)

    base = jnp.float32(smoothing / num_classes)
    w = jnp.where(onehot, jnp.float32(confidence) + base, base)  # (tn, C) f32
    corr = jnp.sum(w * xf, axis=-1, keepdims=True)               # (tn, 1)

    loss_ref[...] = lse - corr


def label_smoothing_cross_entropy(logits, targets, smoothing=0.1,
                                  block_bytes=None):
    """logits: (N, C) float (f32/bf16), targets: (N,) int. Returns scalar f32."""
    assert smoothing < 1.0
    confidence = 1.0 - smoothing
    n, c = logits.shape
    itemsize = jnp.dtype(logits.dtype).itemsize
    pack = _sublane_packing(logits.dtype)

    # VMEM-capacity-aware block sizing (v7x: 64 MiB VMEM, v5e/v6e: 128 MiB).
    try:
        vmem_cap = int(pltpu.get_tpu_info().vmem_capacity_bytes)
    except Exception:
        vmem_cap = 64 * 1024 * 1024
    if block_bytes is None:
        block_bytes = (4 * 1024 * 1024 if vmem_cap >= 100 * 1024 * 1024
                       else 2 * 1024 * 1024)

    # Rows per logits tile: fill ~block_bytes, never exceed the (packed) batch,
    # and keep a multiple of the sublane packing for the input dtype.
    tn = max(pack, block_bytes // max(1, c * itemsize))
    tn = min(tn, _round_up(n, pack))
    tn = max(pack, (tn // pack) * pack)
    grid_n = pl.cdiv(n, tn)          # ragged tail handled by Pallas OOB drop

    t = targets.astype(jnp.int32).reshape(n, 1)

    kernel = functools.partial(_lsce_kernel, num_classes=c,
                               confidence=confidence, smoothing=smoothing)

    # Scoped-VMEM budget from the actual footprint: double-buffered input
    # block + a few f32 full-tile intermediates + slack, capped at 3/4 of the
    # chip's physical VMEM.
    block_in = tn * c * itemsize
    vmem_needed = 2 * block_in + 4 * tn * c * 4 + (2 * 1024 * 1024)
    vmem_limit = int(min(max(vmem_needed, 16 * 1024 * 1024), (vmem_cap * 3) // 4))

    cost = pl.CostEstimate(
        flops=6 * n * c,
        transcendentals=n * c,
        bytes_accessed=n * c * itemsize + n * 4 + n * 4,
    )

    per_row = pl.pallas_call(
        kernel,
        out_shape=jax.ShapeDtypeStruct((n, 1), jnp.float32),
        grid_spec=pltpu.PrefetchScalarGridSpec(
            num_scalar_prefetch=0,
            grid=(grid_n,),
            in_specs=[
                pl.BlockSpec((tn, c), lambda i: (i, 0)),   # logits tile (true C)
                pl.BlockSpec((tn, 1), lambda i: (i, 0)),   # targets tile
            ],
            out_specs=pl.BlockSpec((tn, 1), lambda i: (i, 0)),
        ),
        compiler_params=pltpu.CompilerParams(
            dimension_semantics=("parallel",),
            vmem_limit_bytes=vmem_limit,
        ),
        cost_estimate=cost,
    )(logits, t)

    # Mean over all (real) rows; tail rows beyond N were never written.
    return jnp.mean(per_row[:, 0])


def _reference(logits, targets, smoothing):
    lp = jax.nn.log_softmax(logits.astype(jnp.float32), axis=-1)
    nll = -jnp.take_along_axis(lp, targets[:, None], axis=-1)[:, 0]
    smooth = -jnp.mean(lp, axis=-1)
    return jnp.mean((1.0 - smoothing) * nll + smoothing * smooth)


if __name__ == "__main__":
    key = jax.random.PRNGKey(0)
    k1, k2 = jax.random.split(key)

    # Check 1: small f32, C not a multiple of 128 (no padding anywhere).
    N, C = 8, 32
    logits = jax.random.normal(k1, (N, C), dtype=jnp.float32)
    targets = jax.random.randint(k2, (N,), 0, C, dtype=jnp.int32)
    loss = label_smoothing_cross_entropy(logits, targets, smoothing=0.1)
    jax.block_until_ready(loss)
    ref = _reference(logits, targets, 0.1)
    assert jnp.allclose(loss, ref, atol=1e-5, rtol=1e-5), (loss, ref)

    # Check 2: bf16 logits, ragged N (tail rows dropped on write), odd C.
    N2, C2 = 10, 48
    logits2 = jax.random.normal(k1, (N2, C2), dtype=jnp.bfloat16)
    targets2 = jax.random.randint(k2, (N2,), 0, C2, dtype=jnp.int32)
    loss2 = label_smoothing_cross_entropy(logits2, targets2, smoothing=0.1)
    jax.block_until_ready(loss2)
    ref2 = _reference(logits2, targets2, 0.1)
    assert jnp.allclose(loss2, ref2, atol=1e-4, rtol=1e-4), (loss2, ref2)

    # Check 3: multi-block grid with a ragged last block (tiny block_bytes).
    N3, C3 = 96, 64
    logits3 = jax.random.normal(k1, (N3, C3), dtype=jnp.float32)
    targets3 = jax.random.randint(k2, (N3,), 0, C3, dtype=jnp.int32)
    loss3 = label_smoothing_cross_entropy(logits3, targets3, smoothing=0.1,
                                          block_bytes=4 * 1024)
    jax.block_until_ready(loss3)
    ref3 = _reference(logits3, targets3, 0.1)
    assert jnp.allclose(loss3, ref3, atol=1e-5, rtol=1e-5), (loss3, ref3)

    print("KERNEL_OK")
</pallas_src>

<mosaic_0001>
module attributes {stable_mosaic.version = 11 : i64} {
  func.func @_lsce_kernel(%arg0: i32, %arg1: memref<8x32xf32, #tpu.memory_space<vmem>>, %arg2: memref<8x1xi32, #tpu.memory_space<vmem>>, %arg3: memref<8x1xf32, #tpu.memory_space<vmem>>) attributes {dimension_semantics = [#tpu.dimension_semantics<parallel>], iteration_bounds = array<i64: 1>, scalar_prefetch = 0 : i64, scratch_operands = 0 : i64, tpu.core_type = #tpu.core_type<tc>, window_params = [{transform_indices = @transform_0, window_bounds = array<i64: 8, 32>}, {transform_indices = @transform_1, window_bounds = array<i64: 8, 1>}, {transform_indices = @transform_2, window_bounds = array<i64: 8, 1>}]} {
    %c0 = arith.constant 0 : index
    %c0_0 = arith.constant 0 : index
    %0 = vector.load %arg1[%c0, %c0_0] : memref<8x32xf32, #tpu.memory_space<vmem>>, vector<8x32xf32>
    %c0_1 = arith.constant 0 : index
    %c0_2 = arith.constant 0 : index
    %1 = vector.load %arg2[%c0_1, %c0_2] : memref<8x1xi32, #tpu.memory_space<vmem>>, vector<8x1xi32>
    %2 = tpu.iota {dimensions = array<i32: 1>} : vector<1x32xi32>
    %3 = vector.broadcast %2 : vector<1x32xi32> to vector<8x32xi32>
    %4 = vector.broadcast %1 : vector<8x1xi32> to vector<8x32xi32>
    %5 = arith.cmpi eq, %3, %4 : vector<8x32xi32>
    %cst = arith.constant dense<0xFF800000> : vector<8xf32>
    %6 = vector.multi_reduction <maximumf>, %0, %cst [1] : vector<8x32xf32> to vector<8xf32>
    %7 = vector.shape_cast %6 : vector<8xf32> to vector<8x1xf32>
    %8 = vector.broadcast %7 : vector<8x1xf32> to vector<8x32xf32>
    %9 = arith.subf %0, %8 : vector<8x32xf32>
    %10 = math.exp %9 : vector<8x32xf32>
    %cst_3 = arith.constant dense<0.000000e+00> : vector<8xf32>
    %11 = vector.multi_reduction <add>, %10, %cst_3 [1] : vector<8x32xf32> to vector<8xf32>
    %12 = vector.shape_cast %11 : vector<8xf32> to vector<8x1xf32>
    %13 = math.log %12 : vector<8x1xf32>
    %14 = arith.addf %7, %13 : vector<8x1xf32>
    %cst_4 = arith.constant 0.899999976 : f32
    %cst_5 = arith.constant 3.125000e-03 : f32
    %15 = arith.addf %cst_4, %cst_5 : f32
    %cst_6 = arith.constant 3.125000e-03 : f32
    %16 = vector.broadcast %15 : f32 to vector<8x32xf32>
    %17 = vector.broadcast %cst_6 : f32 to vector<8x32xf32>
    %18 = arith.select %5, %16, %17 : vector<8x32xi1>, vector<8x32xf32>
    %19 = arith.mulf %18, %0 : vector<8x32xf32>
    %cst_7 = arith.constant dense<0.000000e+00> : vector<8xf32>
    %20 = vector.multi_reduction <add>, %19, %cst_7 [1] : vector<8x32xf32> to vector<8xf32>
    %21 = vector.shape_cast %20 : vector<8xf32> to vector<8x1xf32>
    %22 = arith.subf %14, %21 : vector<8x1xf32>
    %c0_8 = arith.constant 0 : index
    %c0_9 = arith.constant 0 : index
    %23 = vector.load %arg3[%c0_8, %c0_9] : memref<8x1xf32, #tpu.memory_space<vmem>>, vector<8x1xf32>
    tpu.vector_store %arg3[%c0_8, %c0_9], %22 {strides = array<i32>} : memref<8x1xf32, #tpu.memory_space<vmem>>, vector<8x1xf32>,
    return
  }
  func.func @transform_0(%arg0: i32) -> (i32, i32) {
    %c0_i32 = arith.constant 0 : i32
    %c0_i32_0 = arith.constant 0 : i32
    return %arg0, %c0_i32 : i32, i32
  }
  func.func @transform_1(%arg0: i32) -> (i32, i32) {
    %c0_i32 = arith.constant 0 : i32
    %c0_i32_0 = arith.constant 0 : i32
    return %arg0, %c0_i32 : i32, i32
  }
  func.func @transform_2(%arg0: i32) -> (i32, i32) {
    %c0_i32 = arith.constant 0 : i32
    %c0_i32_0 = arith.constant 0 : i32
    return %arg0, %c0_i32 : i32, i32
  }
}

</mosaic_0001>

<llo_original>
// kernel: tpu_custom_call.1
$region0: #{tpu_custom_call.1}
  #allocation0 [shape = 'u32[]', space=smem, size = 0x4, offset = 0x4, fixed_abs, tag = 'smem constant byte address 0x4 - core index']
  #allocation1 [shape = 'u32[144,128]{1,0:T(1,128)}', space=vmem, size = 0x12000, scoped, tag = 'internal scratch']
  %s0 = inlined_call_operand.vmem [shape: f32[8,32], index: 0, kind: input, shape index: {}]
  %s1 = inlined_call_operand.vmem [shape: s32[8,1], index: 1, kind: input, shape index: {}]
  %s2 = inlined_call_operand.vmem [shape: f32[8,1], index: 2, kind: output, shape index: {}]
  %s3 = sld [smem:[#allocation0]]
  $region18: #{tpu_custom_call.1} parent=0
    _
  %s5 = ssub.s32 1, %s3
  %s6 = scalar_select 0, %s5, %s3
  // Predicated region
  $region2: #{tpu_custom_call.1} parent=0 // pred_check
    _
  $region3: #{tpu_custom_call.1} parent=0 // pred_check_branch
    %8 = sbr.rel (0) target = $region5
  $region4: #{tpu_custom_call.1} parent=0 // pred_region
    _
  $region5: #{tpu_custom_call.1} parent=0 // pred_fallthru
    _
  // Predicated region
  $region6: #{tpu_custom_call.1} parent=0 // pred_check
    _
  $region7: #{tpu_custom_call.1} parent=0 // pred_check_branch
    %10 = sbr.rel (0) target = $region9
  $region8: #{tpu_custom_call.1} parent=0 // pred_region
    _
  $region9: #{tpu_custom_call.1} parent=0 // pred_fallthru
    _
  %v11 = vld [vmem:[%s0] sm:$0xff]
  %v12 = vld [vmem:[%s1] sm:$0xff]
  %v13 = vlaneseq
  %v14 = vand.u32 %v13, 127
  %15 = vset.pattern.permute.xlu0 0
  %16 = vperm.xlu0 %15, %v12
  %v17 = vpop.permute.xlu0 %16
  %vm18 = vcmp.eq.s32.totalorder %v14, %v17
  %vm19 = vcmask 261120
  %v20 = vsel %vm19, %v11, -inf
  %21 = vmax.xlane.f32.xlu0 %v20
  %v22 = vpop.xlane.xlu0 %21
  %v23 = vsub.f32 %v11, %v22
  %v24 = vmul.f32 %v23, 1.442695
  %v25 = vpow.pop %v24
  %v26 = vsel %vm19, %v25, 0.0
  %27 = vadd.xlane.f32.xlu0 %v26
  %v28 = vpop.xlane.xlu0 %27
  %v29 = vlog2.pop %v28
  %v30 = vmul.f32 %v29, 0.6931472
  %v31 = vadd.f32 %v22, %v30
  %v32 = vsel %vm18, 0.903125, 0.003125
  %v33 = vmul.f32 %v32, %v11
  %v34 = vsel %vm19, %v33, 0.0
  %35 = vadd.xlane.f32.xlu0 %v34
  %v36 = vpop.xlane.xlu0 %35
  %v37 = vsub.f32 %v31, %v36
  %vm38 = vcmask 7168
  %39 = vst.msk [vmem:[%s2] sm:$0xff] %vm38, %v37
  // Predicated region
  $region10: #{tpu_custom_call.1} parent=0 // pred_check
    _
  $region11: #{tpu_custom_call.1} parent=0 // pred_check_branch
    %41 = sbr.rel (0) target = $region13
  $region12: #{tpu_custom_call.1} parent=0 // pred_region
    _
  $region13: #{tpu_custom_call.1} parent=0 // pred_fallthru
    _
  // Predicated region
  $region14: #{tpu_custom_call.1} parent=0 // pred_check
    _
  $region15: #{tpu_custom_call.1} parent=0 // pred_check_branch
    %43 = sbr.rel (0) target = $region17
  $region16: #{tpu_custom_call.1} parent=0 // pred_region
    _
  $region17: #{tpu_custom_call.1} parent=0 // pred_fallthru
    _

</llo_original>
